<compile_context>
chip_gen: v7x
topology: tpu7x:2x2x1
jax: 0.10.0
libtpu: 0.0.40
codegen_flags: <defaults>
</compile_context>

<pallas_src>
import functools
import math

import jax
import jax.numpy as jnp
from jax.experimental import pallas as pl
from jax.experimental.pallas import tpu as pltpu


def _round_up(a, b):
    return ((a + b - 1) // b) * b


# VMEM working-set budget: leaves headroom under v7x's 64 MiB physical VMEM
# (v5e/v6e have 128 MiB, so this is conservative there).
_VMEM_BUDGET = 48 * 1024 * 1024


def _cube_embed_kernel(x_ref, w_ref, b_ref, g_ref, beta_ref, o_ref, *, e_valid):
    """One token-tile of Conv3d-as-GEMM + bias + LayerNorm, E-major.

    x_ref:    (Kpad, TM)   bf16  -- im2col patches (K on sublanes, tokens on lanes)
    w_ref:    (Epad, Kpad) bf16  -- Conv3d weight as a dense projection
    b/g/beta: (Epad, 1)    f32   -- bias / LN gamma / LN beta (zero in padded rows)
    o_ref:    (Epad, TM)         -- already channel-major, lane-dense in tokens
    """
    # bf16 operands -> native MXU path; accumulate in f32.
    y = jnp.dot(w_ref[...], x_ref[...], preferred_element_type=jnp.float32)
    y = y + b_ref[...]

    epad = y.shape[0]
    inv_e = 1.0 / float(e_valid)
    if e_valid == epad:
        # LayerNorm over embed_dim (rows); PyTorch semantics: biased var, eps=1e-5.
        mean = jnp.sum(y, axis=0, keepdims=True) * inv_e
        centered = y - mean
    else:
        # Padded rows of y are exactly zero (zero weight rows, zero bias), so
        # sum(y) over Epad == sum over the real E rows.  Mask the centered
        # values so the variance only sees the real rows.
        row = jax.lax.broadcasted_iota(jnp.int32, (epad, 1), 0)
        mean = jnp.sum(y, axis=0, keepdims=True) * inv_e
        centered = jnp.where(row < e_valid, y - mean, 0.0)

    var = jnp.sum(centered * centered, axis=0, keepdims=True) * inv_e
    y = centered * jax.lax.rsqrt(var + 1e-5)
    y = y * g_ref[...] + beta_ref[...]            # padded rows: gamma = beta = 0
    o_ref[...] = y.astype(o_ref.dtype)


def _fused_proj_norm(patches, w, b, g, beta, *, e_valid, tm, out_dtype):
    """patches: (Kpad, M) bf16; w: (Epad, Kpad) bf16; b/g/beta: (Epad, 1) f32.

    Returns the projected + LayerNorm'd tokens as an (e_valid, M) array.
    """
    Kpad, M = patches.shape
    Epad = w.shape[0]
    out_isz = jnp.dtype(out_dtype).itemsize

    # Token tile (lane axis of the output): multiple of 128, as large as the
    # VMEM budget allows -- bigger tiles amortize the ~0.35 us/step pipeline
    # overhead; 512 is the measured v6e sweet spot.
    tm_eff = max(128, _round_up(min(tm, _round_up(M, 128)), 128))

    # Give the single "parallel" axis >= 2 steps when there is enough work so
    # both of v7x's TensorCores get a share of it.
    if M > 256 and M <= tm_eff:
        tm_eff = max(128, _round_up(-(-M // 2), 128))

    # Double-buffered x/out tiles + (double-buffered) resident weight +
    # bias/gamma/beta + in-kernel f32 temporaries.  Shrink the tile until it
    # fits the budget (matters for v7x's 64 MiB physical VMEM).
    def _working_set(t):
        return (2 * Kpad * t * 2              # patch tiles (bf16)
                + 2 * Epad * Kpad * 2         # weight (bf16, double-buffered)
                + 3 * 2 * Epad * 128 * 4      # (Epad, 1) vectors, lane-padded
                + 2 * Epad * t * out_isz      # output tiles
                + 4 * Epad * t * 4)           # in-kernel f32 temporaries

    while tm_eff > 128 and _working_set(tm_eff) > _VMEM_BUDGET:
        tm_eff = max(128, _round_up(tm_eff // 2, 128))

    Mpad = _round_up(M, tm_eff)
    if Mpad != M:
        patches = jnp.pad(patches, ((0, 0), (0, Mpad - M)))

    kernel = functools.partial(_cube_embed_kernel, e_valid=e_valid)

    # Explicit scoped-VMEM limit: never below the 32 MiB default (v6e/v7x),
    # never above what leaves headroom on v7x's 64 MiB physical VMEM.
    vmem_limit = int(min(max(int(1.25 * _working_set(tm_eff)) + (2 << 20),
                             32 << 20), 56 << 20))

    y = pl.pallas_call(
        kernel,
        out_shape=jax.ShapeDtypeStruct((Epad, Mpad), out_dtype),
        grid_spec=pltpu.PrefetchScalarGridSpec(
            num_scalar_prefetch=0,
            grid=(Mpad // tm_eff,),
            in_specs=[
                pl.BlockSpec((Kpad, tm_eff), lambda i: (0, i)),   # patches
                pl.BlockSpec((Epad, Kpad), lambda i: (0, 0)),     # weight (resident)
                pl.BlockSpec((Epad, 1), lambda i: (0, 0)),        # bias
                pl.BlockSpec((Epad, 1), lambda i: (0, 0)),        # gamma
                pl.BlockSpec((Epad, 1), lambda i: (0, 0)),        # beta
            ],
            out_specs=pl.BlockSpec((Epad, tm_eff), lambda i: (0, i)),
        ),
        compiler_params=pltpu.CompilerParams(
            dimension_semantics=("parallel",),
            vmem_limit_bytes=vmem_limit),
    )(patches, w, b, g, beta)

    if Epad != e_valid or Mpad != M:
        y = y[:e_valid, :M]
    return y


def prepare_params(params, *, compute_dtype=jnp.bfloat16, pad_k_to=128):
    """One-time conversion of PyTorch-style params to kernel-ready tensors.

    NOTE: masked-LayerNorm correctness relies on the padded weight rows and
    bias/gamma/beta rows being exactly zero.  If params are later re-scaled or
    quantized, re-run this function (or re-zero the padding).
    """
    proj_w = params["proj_w"]                       # (E, C, pT, pLa, pLo)
    E = proj_w.shape[0]
    K = math.prod(proj_w.shape[1:])
    Epad = _round_up(E, 16)                         # sublane-aligned rows
    Kpad = _round_up(K, pad_k_to)                   # lane-dense weight / full MXU K

    w = jnp.asarray(proj_w).reshape(E, K)           # natural (E, K); no transpose
    w = jnp.pad(w, ((0, Epad - E), (0, Kpad - K))).astype(compute_dtype)

    def _col(v):
        v = jnp.pad(jnp.asarray(v, jnp.float32), (0, Epad - E))
        return v.reshape(Epad, 1)

    return dict(w=w, b=_col(params["proj_b"]), gamma=_col(params["ln_gamma"]),
                beta=_col(params["ln_beta"]))


def cube_embedding_forward(x, prepared, *, patch_size, embed_dim, tm=512,
                           out_dtype=None):
    """x: (B, C, T, Lat, Lon) -> (B, E, T', Lat', Lon')  (T' squeezed if 1).

    Matches the PyTorch CubeEmbedding.forward: dim 1 of x is the Conv3d input
    channel dim (the module unpacks it as `T` but feeds it to Conv3d as C).
    Pass out_dtype=jnp.bfloat16 to halve the kernel's HBM writeback when the
    downstream consumer is bf16; default preserves the input dtype.
    """
    B, C, T, Lat, Lon = x.shape
    pT, pLa, pLo = patch_size
    Tn, Lan, Lonn = T // pT, Lat // pLa, Lon // pLo
    K = C * pT * pLa * pLo
    M = B * Tn * Lan * Lonn

    w = prepared["w"]
    Epad, Kpad = w.shape
    out_dtype = x.dtype if out_dtype is None else out_dtype

    # ---- glue: extract non-overlapping 3D patches, K-major, so the kernel
    # output is already channel-major.  One XLA shuffle over x; the bf16 cast
    # fuses into it and halves the written bytes.
    xp = x.reshape(B, C, Tn, pT, Lan, pLa, Lonn, pLo)
    xp = xp.transpose(1, 3, 5, 7, 0, 2, 4, 6)       # (C,pT,pLa,pLo, B,T',La',Lo')
    patches = xp.reshape(K, M).astype(w.dtype)
    if Kpad != K:                                   # usually a no-op
        patches = jnp.pad(patches, ((0, Kpad - K), (0, 0)))

    # ---- hot path: fused GEMM + bias + LayerNorm, E-major output ----
    y = _fused_proj_norm(patches, w, prepared["b"], prepared["gamma"],
                         prepared["beta"], e_valid=embed_dim, tm=tm,
                         out_dtype=out_dtype)       # (E, M)

    # ---- glue: (E, M) -> (B, E, T', Lat', Lon').  The permute only moves
    # contiguous chunks of length T'*Lat'*Lon' (cheap; trivial when B == 1).
    y = y.reshape(embed_dim, B, Tn, Lan, Lonn).transpose(1, 0, 2, 3, 4)
    if Tn == 1:
        y = jnp.squeeze(y, axis=2)
    return y


def init_params(key, in_chans, embed_dim, patch_size):
    pT, pLa, pLo = patch_size
    k_w, k_b = jax.random.split(key)
    fan_in = in_chans * pT * pLa * pLo
    bound = 1.0 / (fan_in ** 0.5)
    proj_w = jax.random.uniform(
        k_w, (embed_dim, in_chans, pT, pLa, pLo),
        minval=-bound, maxval=bound, dtype=jnp.float32)
    proj_b = jax.random.uniform(
        k_b, (embed_dim,), minval=-bound, maxval=bound, dtype=jnp.float32)
    ln_gamma = jnp.ones((embed_dim,), jnp.float32)
    ln_beta = jnp.zeros((embed_dim,), jnp.float32)
    return dict(proj_w=proj_w, proj_b=proj_b, ln_gamma=ln_gamma, ln_beta=ln_beta)


def _reference(x, params, *, patch_size, compute_dtype=jnp.bfloat16):
    """Pure-JAX reference of the PyTorch forward.

    Operands are rounded to the same compute dtype as the kernel's MXU inputs
    (accumulation and LayerNorm in f32), so the comparison stays tight.
    """
    B, C, T, Lat, Lon = x.shape
    pT, pLa, pLo = patch_size
    Tn, Lan, Lonn = T // pT, Lat // pLa, Lon // pLo
    E = params["proj_w"].shape[0]
    y = jax.lax.conv_general_dilated(
        x.astype(compute_dtype), params["proj_w"].astype(compute_dtype),
        window_strides=(pT, pLa, pLo), padding="VALID",
        dimension_numbers=("NCDHW", "OIDHW", "NCDHW"),
        preferred_element_type=jnp.float32)
    y = y + params["proj_b"].reshape(1, E, 1, 1, 1)
    yl = y.reshape(B, E, -1).transpose(0, 2, 1)      # (B, N, E)
    mean = jnp.mean(yl, -1, keepdims=True)
    var = jnp.mean((yl - mean) ** 2, -1, keepdims=True)
    yl = (yl - mean) / jnp.sqrt(var + 1e-5)
    yl = yl * params["ln_gamma"] + params["ln_beta"]
    y = yl.transpose(0, 2, 1).reshape(B, E, Tn, Lan, Lonn).astype(x.dtype)
    if Tn == 1:
        y = jnp.squeeze(y, axis=2)
    return y


if __name__ == "__main__":
    # Small, module-consistent shapes:
    #   img_size = (T=2, Lat=16, Lon=16), patch_size = (2, 4, 4)
    #   in_chans = 4, embed_dim = 32  -> patches_resolution = (1, 4, 4)
    img_size = (2, 16, 16)
    patch_size = (2, 4, 4)
    in_chans = 4
    embed_dim = 32
    B = 2

    key = jax.random.PRNGKey(0)
    k_x, k_p = jax.random.split(key)
    # layout: (B, C=in_chans, T, Lat, Lon) -- matches the tensor actually fed
    # to nn.Conv3d in the PyTorch forward (dim 1 is the conv input-channel dim).
    x = jax.random.normal(
        k_x, (B, in_chans, img_size[0], img_size[1], img_size[2]), jnp.float32)
    params = init_params(k_p, in_chans, embed_dim, patch_size)

    # One-time param prep (weight -> (Epad, Kpad) bf16, vectors -> (Epad, 1) f32).
    prepared = prepare_params(params, compute_dtype=jnp.bfloat16)

    fwd = functools.partial(cube_embedding_forward,
                            patch_size=patch_size, embed_dim=embed_dim)
    out = jax.block_until_ready(jax.jit(fwd)(x, prepared))

    ref = _reference(x, params, patch_size=patch_size,
                     compute_dtype=jnp.bfloat16)
    assert out.shape == ref.shape == (B, embed_dim, 4, 4), out.shape
    assert jnp.allclose(out, ref, atol=2e-3, rtol=2e-3), (
        float(jnp.max(jnp.abs(out - ref))))

    # bf16-output path (halves HBM writeback); looser tolerance for the cast.
    fwd_bf16 = functools.partial(cube_embedding_forward,
                                 patch_size=patch_size, embed_dim=embed_dim,
                                 out_dtype=jnp.bfloat16)
    out_bf16 = jax.block_until_ready(jax.jit(fwd_bf16)(x, prepared))
    assert out_bf16.shape == ref.shape
    assert jnp.allclose(out_bf16.astype(jnp.float32), ref, atol=2e-2, rtol=2e-2), (
        float(jnp.max(jnp.abs(out_bf16.astype(jnp.float32) - ref))))

    print("KERNEL_OK")
</pallas_src>

<mosaic_0001>
module attributes {stable_mosaic.version = 11 : i64} {
  func.func @_cube_embed_kernel(%arg0: i32, %arg1: memref<128x128xbf16, #tpu.memory_space<vmem>>, %arg2: memref<32x128xbf16, #tpu.memory_space<vmem>>, %arg3: memref<32x1xf32, #tpu.memory_space<vmem>>, %arg4: memref<32x1xf32, #tpu.memory_space<vmem>>, %arg5: memref<32x1xf32, #tpu.memory_space<vmem>>, %arg6: memref<32x128xf32, #tpu.memory_space<vmem>>) attributes {dimension_semantics = [#tpu.dimension_semantics<parallel>], iteration_bounds = array<i64: 1>, scalar_prefetch = 0 : i64, scratch_operands = 0 : i64, tpu.core_type = #tpu.core_type<tc>, window_params = [{transform_indices = @transform_0, window_bounds = array<i64: 128, 128>}, {pipeline_mode = #tpu.pipeline_mode<synchronous>, transform_indices = @transform_1, window_bounds = array<i64: 32, 128>}, {pipeline_mode = #tpu.pipeline_mode<synchronous>, transform_indices = @transform_2, window_bounds = array<i64: 32, 1>}, {pipeline_mode = #tpu.pipeline_mode<synchronous>, transform_indices = @transform_3, window_bounds = array<i64: 32, 1>}, {pipeline_mode = #tpu.pipeline_mode<synchronous>, transform_indices = @transform_4, window_bounds = array<i64: 32, 1>}, {transform_indices = @transform_5, window_bounds = array<i64: 32, 128>}]} {
    %c0 = arith.constant 0 : index
    %c0_0 = arith.constant 0 : index
    %0 = vector.load %arg2[%c0, %c0_0] : memref<32x128xbf16, #tpu.memory_space<vmem>>, vector<32x128xbf16>
    %c0_1 = arith.constant 0 : index
    %c0_2 = arith.constant 0 : index
    %1 = vector.load %arg1[%c0_1, %c0_2] : memref<128x128xbf16, #tpu.memory_space<vmem>>, vector<128x128xbf16>
    %cst = arith.constant dense<0.000000e+00> : vector<32x128xf32>
    %2 = tpu.matmul %0, %1, %cst {dimension_numbers = #tpu.dot_dimension_numbers<[1], [0], [0], [1], [0, 0, 1, 1], [], []>} : vector<32x128xbf16>, vector<128x128xbf16>, vector<32x128xf32> -> vector<32x128xf32>
    %c0_3 = arith.constant 0 : index
    %c0_4 = arith.constant 0 : index
    %3 = vector.load %arg3[%c0_3, %c0_4] : memref<32x1xf32, #tpu.memory_space<vmem>>, vector<32x1xf32>
    %4 = vector.broadcast %3 : vector<32x1xf32> to vector<32x128xf32>
    %5 = arith.addf %2, %4 : vector<32x128xf32>
    %cst_5 = arith.constant dense<0.000000e+00> : vector<128xf32>
    %6 = vector.multi_reduction <add>, %5, %cst_5 [0] : vector<32x128xf32> to vector<128xf32>
    %7 = vector.shape_cast %6 : vector<128xf32> to vector<1x128xf32>
    %cst_6 = arith.constant 3.125000e-02 : f32
    %8 = vector.broadcast %cst_6 : f32 to vector<1x128xf32>
    %9 = arith.mulf %7, %8 : vector<1x128xf32>
    %10 = vector.broadcast %9 : vector<1x128xf32> to vector<32x128xf32>
    %11 = arith.subf %5, %10 : vector<32x128xf32>
    %12 = arith.mulf %11, %11 : vector<32x128xf32>
    %cst_7 = arith.constant dense<0.000000e+00> : vector<128xf32>
    %13 = vector.multi_reduction <add>, %12, %cst_7 [0] : vector<32x128xf32> to vector<128xf32>
    %14 = vector.shape_cast %13 : vector<128xf32> to vector<1x128xf32>
    %cst_8 = arith.constant 3.125000e-02 : f32
    %15 = vector.broadcast %cst_8 : f32 to vector<1x128xf32>
    %16 = arith.mulf %14, %15 : vector<1x128xf32>
    %cst_9 = arith.constant 9.99999974E-6 : f32
    %17 = vector.broadcast %cst_9 : f32 to vector<1x128xf32>
    %18 = arith.addf %16, %17 : vector<1x128xf32>
    %19 = math.rsqrt %18 : vector<1x128xf32>
    %20 = vector.broadcast %19 : vector<1x128xf32> to vector<32x128xf32>
    %21 = arith.mulf %11, %20 : vector<32x128xf32>
    %c0_10 = arith.constant 0 : index
    %c0_11 = arith.constant 0 : index
    %22 = vector.load %arg4[%c0_10, %c0_11] : memref<32x1xf32, #tpu.memory_space<vmem>>, vector<32x1xf32>
    %23 = vector.broadcast %22 : vector<32x1xf32> to vector<32x128xf32>
    %24 = arith.mulf %21, %23 : vector<32x128xf32>
    %c0_12 = arith.constant 0 : index
    %c0_13 = arith.constant 0 : index
    %25 = vector.load %arg5[%c0_12, %c0_13] : memref<32x1xf32, #tpu.memory_space<vmem>>, vector<32x1xf32>
    %26 = vector.broadcast %25 : vector<32x1xf32> to vector<32x128xf32>
    %27 = arith.addf %24, %26 : vector<32x128xf32>
    %c0_14 = arith.constant 0 : index
    %c0_15 = arith.constant 0 : index
    %28 = vector.load %arg6[%c0_14, %c0_15] : memref<32x128xf32, #tpu.memory_space<vmem>>, vector<32x128xf32>
    tpu.vector_store %arg6[%c0_14, %c0_15], %27 {strides = array<i32>} : memref<32x128xf32, #tpu.memory_space<vmem>>, vector<32x128xf32>,
    return
  }
  func.func @transform_0(%arg0: i32) -> (i32, i32) {
    %c0_i32 = arith.constant 0 : i32
    %c0_i32_0 = arith.constant 0 : i32
    return %c0_i32, %arg0 : i32, i32
  }
  func.func @transform_1(%arg0: i32) -> (i32, i32) {
    %c0_i32 = arith.constant 0 : i32
    %c0_i32_0 = arith.constant 0 : i32
    %c0_i32_1 = arith.constant 0 : i32
    return %c0_i32, %c0_i32_0 : i32, i32
  }
  func.func @transform_2(%arg0: i32) -> (i32, i32) {
    %c0_i32 = arith.constant 0 : i32
    %c0_i32_0 = arith.constant 0 : i32
    %c0_i32_1 = arith.constant 0 : i32
    return %c0_i32, %c0_i32_0 : i32, i32
  }
  func.func @transform_3(%arg0: i32) -> (i32, i32) {
    %c0_i32 = arith.constant 0 : i32
    %c0_i32_0 = arith.constant 0 : i32
    %c0_i32_1 = arith.constant 0 : i32
    return %c0_i32, %c0_i32_0 : i32, i32
  }
  func.func @transform_4(%arg0: i32) -> (i32, i32) {
    %c0_i32 = arith.constant 0 : i32
    %c0_i32_0 = arith.constant 0 : i32
    %c0_i32_1 = arith.constant 0 : i32
    return %c0_i32, %c0_i32_0 : i32, i32
  }
  func.func @transform_5(%arg0: i32) -> (i32, i32) {
    %c0_i32 = arith.constant 0 : i32
    %c0_i32_0 = arith.constant 0 : i32
    return %c0_i32, %arg0 : i32, i32
  }
}

</mosaic_0001>

<llo_original>
// kernel: cube_embedding_forward.1
$region0: #{cube_embedding_forward.1}
  #allocation0 [shape = 'u32[]', space=smem, size = 0x4, offset = 0x4, fixed_abs, tag = 'smem constant byte address 0x4 - core index']
  #allocation1 [shape = 'u32[144,128]{1,0:T(1,128)}', space=vmem, size = 0x12000, scoped, tag = 'internal scratch']
  %s0 = inlined_call_operand.vmem [shape: bf16[128,128], index: 0, kind: input, shape index: {}]
  %s1 = inlined_call_operand.vmem [shape: bf16[32,128], index: 1, kind: input, shape index: {}]
  %s2 = inlined_call_operand.vmem [shape: f32[32,1], index: 2, kind: input, shape index: {}]
  %s3 = inlined_call_operand.vmem [shape: f32[32,1], index: 3, kind: input, shape index: {}]
  %s4 = inlined_call_operand.vmem [shape: f32[32,1], index: 4, kind: input, shape index: {}]
  %s5 = inlined_call_operand.vmem [shape: f32[32,128], index: 5, kind: output, shape index: {}]
  %s6 = sld [smem:[#allocation0]]
  $region30: #{cube_embedding_forward.1} parent=0
    _
  %s8 = ssub.s32 1, %s6
  %s9 = scalar_select 0, %s8, %s6
  // Predicated region
  $region2: #{cube_embedding_forward.1} parent=0 // pred_check
    _
  $region3: #{cube_embedding_forward.1} parent=0 // pred_check_branch
    %11 = sbr.rel (0) target = $region5
  $region4: #{cube_embedding_forward.1} parent=0 // pred_region
    _
  $region5: #{cube_embedding_forward.1} parent=0 // pred_fallthru
    _
  // Predicated region
  $region6: #{cube_embedding_forward.1} parent=0 // pred_check
    _
  $region7: #{cube_embedding_forward.1} parent=0 // pred_check_branch
    %13 = sbr.rel (0) target = $region9
  $region8: #{cube_embedding_forward.1} parent=0 // pred_region
    _
  $region9: #{cube_embedding_forward.1} parent=0 // pred_fallthru
    _
  // Predicated region
  $region10: #{cube_embedding_forward.1} parent=0 // pred_check
    _
  $region11: #{cube_embedding_forward.1} parent=0 // pred_check_branch
    %15 = sbr.rel (0) target = $region13
  $region12: #{cube_embedding_forward.1} parent=0 // pred_region
    _
  $region13: #{cube_embedding_forward.1} parent=0 // pred_fallthru
    _
  // Predicated region
  $region14: #{cube_embedding_forward.1} parent=0 // pred_check
    _
  $region15: #{cube_embedding_forward.1} parent=0 // pred_check_branch
    %17 = sbr.rel (0) target = $region17
  $region16: #{cube_embedding_forward.1} parent=0 // pred_region
    _
  $region17: #{cube_embedding_forward.1} parent=0 // pred_fallthru
    _
  // Predicated region
  $region18: #{cube_embedding_forward.1} parent=0 // pred_check
    _
  $region19: #{cube_embedding_forward.1} parent=0 // pred_check_branch
    %19 = sbr.rel (0) target = $region21
  $region20: #{cube_embedding_forward.1} parent=0 // pred_region
    _
  $region21: #{cube_embedding_forward.1} parent=0 // pred_fallthru
    _
  %v21 = vld [vmem:[%s1] sm:$0xf]
  %v22 = vld [vmem:[%s1 + $0x4] sm:$0xf]
  %v23 = vld [vmem:[%s1 + $0x8] sm:$0xf]
  %v24 = vld [vmem:[%s1 + $0xc] sm:$0xf]
  %v25 = vld [vmem:[%s0] sm:$0xf]
  %v26 = vld [vmem:[%s0 + $0x4] sm:$0xf]
  %v27 = vld [vmem:[%s0 + $0x8] sm:$0xf]
  %v28 = vld [vmem:[%s0 + $0xc] sm:$0xf]
  %v29 = vld [vmem:[%s0 + $0x10] sm:$0xf]
  %v30 = vld [vmem:[%s0 + $0x14] sm:$0xf]
  %v31 = vld [vmem:[%s0 + $0x18] sm:$0xf]
  %v32 = vld [vmem:[%s0 + $0x1c] sm:$0xf]
  %v33 = vld [vmem:[%s0 + $0x20] sm:$0xf]
  %v34 = vld [vmem:[%s0 + $0x24] sm:$0xf]
  %v35 = vld [vmem:[%s0 + $0x28] sm:$0xf]
  %v36 = vld [vmem:[%s0 + $0x2c] sm:$0xf]
  %v37 = vld [vmem:[%s0 + $0x30] sm:$0xf]
  %v38 = vld [vmem:[%s0 + $0x34] sm:$0xf]
  %v39 = vld [vmem:[%s0 + $0x38] sm:$0xf]
  %v40 = vld [vmem:[%s0 + $0x3c] sm:$0xf]
  %v41 = vld [vmem:[%s2] sm:$0xff]
  %v42 = vld [vmem:[%s2 + $0x8] sm:$0xff]
  %v43 = vld [vmem:[%s2 + $0x10] sm:$0xff]
  %v44 = vld [vmem:[%s2 + $0x18] sm:$0xff]
  %46 = vset.pattern.permute.xlu0 0
  %47 = vperm.xlu0 %46, %v41
  %v48 = vpop.permute.xlu0 %47
  %51 = vset.pattern.permute.xlu0 0
  %52 = vperm.xlu0 %51, %v42
  %v53 = vpop.permute.xlu0 %52
  %56 = vset.pattern.permute.xlu0 0
  %57 = vperm.xlu0 %56, %v43
  %v58 = vpop.permute.xlu0 %57
  %61 = vset.pattern.permute.xlu0 0
  %62 = vperm.xlu0 %61, %v44
  %v63 = vpop.permute.xlu0 %62
  %v69 = vunpack.c.l.b16 %v21
  %v70 = vunpack.c.l.b16 %v22
  %v71 = vunpack.c.l.b16 %v23
  %v72 = vunpack.c.l.b16 %v24
  %v73 = vpack.c.b16 %v70, %v69
  %v74 = vpack.c.b16 %v72, %v71
  %v93 = vunpack.c.l.b16 %v25
  %v94 = vunpack.c.l.b16 %v26
  %v95 = vunpack.c.l.b16 %v27
  %v96 = vunpack.c.l.b16 %v28
  %v97 = vunpack.c.l.b16 %v29
  %v98 = vunpack.c.l.b16 %v30
  %v99 = vunpack.c.l.b16 %v31
  %v100 = vunpack.c.l.b16 %v32
  %v101 = vunpack.c.l.b16 %v33
  %v102 = vunpack.c.l.b16 %v34
  %v103 = vunpack.c.l.b16 %v35
  %v104 = vunpack.c.l.b16 %v36
  %v105 = vunpack.c.l.b16 %v37
  %v106 = vunpack.c.l.b16 %v38
  %v107 = vunpack.c.l.b16 %v39
  %v108 = vunpack.c.l.b16 %v40
  %v109 = vpack.c.b16 %v94, %v93
  %v110 = vpack.c.b16 %v96, %v95
  %v111 = vpack.c.b16 %v98, %v97
  %v112 = vpack.c.b16 %v100, %v99
  %v113 = vpack.c.b16 %v102, %v101
  %v114 = vpack.c.b16 %v104, %v103
  %v115 = vpack.c.b16 %v106, %v105
  %v116 = vpack.c.b16 %v108, %v107
  %125 = vmatprep.subr.bf16.mxu0 0
  %126 = vmatpush1.bf16.msra.mxu0 %v109
  %127 = vmatprep.subr.bf16.mxu0 0
  %128 = vmatpush1.bf16.msra.mxu0 %v110
  %129 = vmatprep.subr.bf16.mxu0 0
  %130 = vmatpush1.bf16.msra.mxu0 %v111
  %131 = vmatprep.subr.bf16.mxu0 0
  %132 = vmatpush1.bf16.msra.mxu0 %v112
  %133 = vmatprep.subr.bf16.mxu0 0
  %134 = vmatpush1.bf16.msra.mxu0 %v113
  %135 = vmatprep.subr.bf16.mxu0 0
  %136 = vmatpush1.bf16.msra.mxu0 %v114
  %137 = vmatprep.subr.bf16.mxu0 0
  %138 = vmatpush1.bf16.msra.mxu0 %v115
  %139 = vmatprep.subr.bf16.mxu0 0
  %140 = vmatpush1.bf16.msra.mxu0 %v116
  %141 = vmatprep.subr.bf16.mxu0 0
  %142 = vmatpush1.bf16.msra.mxu0 0
  %143 = vmatprep.subr.bf16.mxu0 0
  %144 = vmatpush1.bf16.msra.mxu0 0
  %145 = vmatprep.subr.bf16.mxu0 0
  %146 = vmatpush1.bf16.msra.mxu0 0
  %147 = vmatprep.subr.bf16.mxu0 0
  %148 = vmatpush1.bf16.msra.mxu0 0
  %149 = vmatprep.subr.bf16.mxu0 0
  %150 = vmatpush1.bf16.msra.mxu0 0
  %151 = vmatprep.subr.bf16.mxu0 0
  %152 = vmatpush1.bf16.msra.mxu0 0
  %153 = vmatprep.subr.bf16.mxu0 0
  %154 = vmatpush1.bf16.msra.mxu0 0
  %155 = vmatprep.subr.bf16.mxu0 0
  %156 = vmatpush1.bf16.msra.mxu0 0
  %157 = vmatprep.mubr.bf16.mxu0 0
  %158 = vmatmul.mubr.bf16.gmra.mrb[0].mxu0 %v73
  %v159 = vpop.f32.mrb[0].mxu0
  %v160 = vadd.f32 %v48, %v159
  %v161 = vpop.f32.mrb[0].mxu0
  %v162 = vpop.f32.mrb[0].mxu0
  %v163 = vadd.f32 %v53, %v162
  %v164 = vpop.f32.mrb[0].mxu0
  %165 = vmatprep.mubr.bf16.mxu0 0
  %166 = vmatmul.mubr.bf16.gmra.mrb[0].mxu0 %v74
  %v167 = vpop.f32.mrb[0].mxu0
  %v168 = vadd.f32 %v58, %v167
  %v169 = vpop.f32.mrb[0].mxu0
  %v170 = vpop.f32.mrb[0].mxu0
  %v171 = vadd.f32 %v63, %v170
  %v172 = vpop.f32.mrb[0].mxu0
  %173 = vdwg.mxu0
  %v174 = vadd.f32 %v160, %v163
  %v175 = vadd.f32 %v174, %v168
  %v176 = vadd.f32 %v175, %v171
  %v177 = vrot.slane %v176, 4
  %v178 = vadd.f32 %v176, %v177
  %v179 = vrot.slane %v178, 2
  %v180 = vadd.f32 %v178, %v179
  %v181 = vrot.slane %v180, 1
  %v182 = vadd.f32 %v180, %v181
  %v183 = vmul.f32 %v182, 0.03125
  %v184 = vsub.f32 %v160, %v183
  %v185 = vsub.f32 %v163, %v183
  %v186 = vsub.f32 %v168, %v183
  %v187 = vsub.f32 %v171, %v183
  %v188 = vmul.f32 %v184, %v184
  %v189 = vmul.f32 %v185, %v185
  %v190 = vmul.f32 %v186, %v186
  %v191 = vmul.f32 %v187, %v187
  %v192 = vadd.f32 %v188, %v189
  %v193 = vadd.f32 %v192, %v190
  %v194 = vadd.f32 %v193, %v191
  %v195 = vrot.slane %v194, 4
  %v196 = vadd.f32 %v194, %v195
  %v197 = vrot.slane %v196, 2
  %v198 = vadd.f32 %v196, %v197
  %v199 = vrot.slane %v198, 1
  %v200 = vadd.f32 %v198, %v199
  %v201 = vmul.f32 %v200, 0.03125
  %v202 = vadd.f32 %v201, 1e-05
  %v203 = vrsqrt.pop %v202
  %v204 = vmul.f32 %v184, %v203
  %v205 = vmul.f32 %v185, %v203
  %v206 = vmul.f32 %v186, %v203
  %v207 = vmul.f32 %v187, %v203
  %v208 = vld [vmem:[%s3] sm:$0xff]
  %v209 = vld [vmem:[%s3 + $0x8] sm:$0xff]
  %v210 = vld [vmem:[%s3 + $0x10] sm:$0xff]
  %v211 = vld [vmem:[%s3 + $0x18] sm:$0xff]
  %213 = vset.pattern.permute.xlu0 0
  %214 = vperm.xlu0 %213, %v208
  %v215 = vpop.permute.xlu0 %214
  %218 = vset.pattern.permute.xlu0 0
  %219 = vperm.xlu0 %218, %v209
  %v220 = vpop.permute.xlu0 %219
  %223 = vset.pattern.permute.xlu0 0
  %224 = vperm.xlu0 %223, %v210
  %v225 = vpop.permute.xlu0 %224
  %228 = vset.pattern.permute.xlu0 0
  %229 = vperm.xlu0 %228, %v211
  %v230 = vpop.permute.xlu0 %229
  %v232 = vmul.f32 %v204, %v215
  %v233 = vmul.f32 %v205, %v220
  %v234 = vmul.f32 %v206, %v225
  %v235 = vmul.f32 %v207, %v230
  %v236 = vld [vmem:[%s4] sm:$0xff]
  %v237 = vld [vmem:[%s4 + $0x8] sm:$0xff]
  %v238 = vld [vmem:[%s4 + $0x10] sm:$0xff]
  %v239 = vld [vmem:[%s4 + $0x18] sm:$0xff]
  %241 = vset.pattern.permute.xlu0 0
  %242 = vperm.xlu0 %241, %v236
  %v243 = vpop.permute.xlu0 %242
  %246 = vset.pattern.permute.xlu0 0
  %247 = vperm.xlu0 %246, %v237
  %v248 = vpop.permute.xlu0 %247
  %251 = vset.pattern.permute.xlu0 0
  %252 = vperm.xlu0 %251, %v238
  %v253 = vpop.permute.xlu0 %252
  %256 = vset.pattern.permute.xlu0 0
  %257 = vperm.xlu0 %256, %v239
  %v258 = vpop.permute.xlu0 %257
  %v260 = vadd.f32 %v232, %v243
  %v261 = vadd.f32 %v233, %v248
  %v262 = vadd.f32 %v234, %v253
  %v263 = vadd.f32 %v235, %v258
  %264 = vst [vmem:[%s5] sm:$0xff] %v260
  %265 = vst [vmem:[%s5 + $0x8] sm:$0xff] %v261
  %266 = vst [vmem:[%s5 + $0x10] sm:$0xff] %v262
  %267 = vst [vmem:[%s5 + $0x18] sm:$0xff] %v263
  // Predicated region
  $region22: #{cube_embedding_forward.1} parent=0 // pred_check
    _
  $region23: #{cube_embedding_forward.1} parent=0 // pred_check_branch
    %269 = sbr.rel (0) target = $region25
  $region24: #{cube_embedding_forward.1} parent=0 // pred_region
    _
  $region25: #{cube_embedding_forward.1} parent=0 // pred_fallthru
    _
  // Predicated region
  $region26: #{cube_embedding_forward.1} parent=0 // pred_check
    _
  $region27: #{cube_embedding_forward.1} parent=0 // pred_check_branch
    %271 = sbr.rel (0) target = $region29
  $region28: #{cube_embedding_forward.1} parent=0 // pred_region
    _
  $region29: #{cube_embedding_forward.1} parent=0 // pred_fallthru
    _

</llo_original>
